<compile_context>
chip_gen: v7x
topology: tpu7x:2x2x1
jax: 0.10.0
libtpu: 0.0.40
codegen_flags: <defaults>
</compile_context>

<pallas_src>
import jax
import jax.numpy as jnp
from jax.experimental import pallas as pl
from jax.experimental.pallas import tpu as pltpu

FEATS = [10, 8, 6, 4, 2, 1]     # layer widths fc1..fc5
N_LAYERS = len(FEATS) - 1
PAD_F = 16                      # every feature dim zero-padded to 16
MAX_BTILE = 2048                # max batch columns (lanes) per grid step
MATMUL_DTYPE = jnp.bfloat16     # MXU operand dtype; accumulation stays f32


def _round_up(n, m):
    return ((n + m - 1) // m) * m


def _tiling(batch):
    """Pick (batch_tile, padded_batch).  Batch is on the lane axis, so tiles
    are 128-aligned.  No forced splits: the grid only grows beyond one step
    when the batch exceeds MAX_BTILE (keeps v5e/v6e single-TC overhead low,
    still gives v7x multiple parallel steps for large batches)."""
    bp = _round_up(max(batch, 1), 128)
    n_tiles = -(-bp // MAX_BTILE)                 # ceil
    bt = _round_up(-(-bp // n_tiles), 128)
    return bt, n_tiles * bt


def _mlp_kernel(x_ref, w_ref, b_ref, o_ref):
    """Full 5-layer MLP forward for one (PAD_F, bt) batch tile, all in VMEM.

    Layers are unrolled; each is a (16,16)x(16,bt) MXU matmul with f32
    accumulation, a lane-broadcast bias add and a ReLU, all lane-dense."""
    h = x_ref[...]                                          # (PAD_F, bt) bf16
    for li in range(N_LAYERS):
        z = jnp.dot(w_ref[li], h, preferred_element_type=jnp.float32)
        z = z + b_ref[li]                                   # (PAD_F, 1) bcast
        if li < N_LAYERS - 1:
            h = jnp.maximum(z, 0.0).astype(MATMUL_DTYPE)
        else:
            h = z                                           # fc5: no ReLU
    o_ref[...] = h[0:1, :]                                  # (1, bt) f32


def pack_params(params):
    """One-time packing (call OUTSIDE the per-step jitted forward).

    Weights: (5, 16, 16) bf16 slab holding W^T (out, in) per layer, zero-padded.
    Biases:  (5, 16, 1) f32 slab, zero-padded.  Zeros in padded slots keep the
    padded feature rows exactly zero through every layer."""
    w_slab = jnp.zeros((N_LAYERS, PAD_F, PAD_F), jnp.float32)
    b_slab = jnp.zeros((N_LAYERS, PAD_F, 1), jnp.float32)
    for i, (w, b) in enumerate(params):
        fin, fout = w.shape                       # stored as (in, out)
        w_slab = w_slab.at[i, :fout, :fin].set(jnp.asarray(w, jnp.float32).T)
        b_slab = b_slab.at[i, :fout, 0].set(jnp.asarray(b, jnp.float32))
    return w_slab.astype(MATMUL_DTYPE), b_slab


@jax.jit
def encoder_net_block(x, w_slab, b_slab):
    """x: (B, 10) float32 -> (B, 1) float32."""
    B = x.shape[0]
    bt, bp = _tiling(B)

    # Ship x transposed + bf16: batch on lanes, features (padded to 16) on
    # sublanes.  Padding rows/columns are zero (padded batch columns produce
    # bias-propagated junk that is sliced off below).
    x_t = jnp.zeros((PAD_F, bp), MATMUL_DTYPE)
    x_t = x_t.at[:FEATS[0], :B].set(x.T.astype(MATMUL_DTYPE))

    out = pl.pallas_call(
        _mlp_kernel,
        out_shape=jax.ShapeDtypeStruct((1, bp), jnp.float32),
        grid_spec=pltpu.PrefetchScalarGridSpec(
            num_scalar_prefetch=0,
            grid=(bp // bt,),
            in_specs=[
                pl.BlockSpec((PAD_F, bt), lambda i: (0, i)),               # x
                pl.BlockSpec((N_LAYERS, PAD_F, PAD_F), lambda i: (0, 0, 0)),  # W slab
                pl.BlockSpec((N_LAYERS, PAD_F, 1), lambda i: (0, 0, 0)),      # b slab
            ],
            out_specs=pl.BlockSpec((1, bt), lambda i: (0, i)),
        ),
        compiler_params=pltpu.CompilerParams(
            dimension_semantics=("parallel",)),
    )(x_t, w_slab, b_slab)

    return out[0, :B][:, None]


def init_params(key):
    """PyTorch nn.Linear default init: U(-1/sqrt(fan_in), 1/sqrt(fan_in)).
    Weights stored as (in, out) so the reference layer is x @ W + b."""
    params = []
    for fan_in, fan_out in zip(FEATS[:-1], FEATS[1:]):
        key, kw, kb = jax.random.split(key, 3)
        bound = 1.0 / jnp.sqrt(jnp.float32(fan_in))
        w = jax.random.uniform(kw, (fan_in, fan_out), jnp.float32, -bound, bound)
        b = jax.random.uniform(kb, (fan_out,), jnp.float32, -bound, bound)
        params.append((w, b))
    return params


def _ref_forward_f32(x, params):
    h = x
    for i, (w, b) in enumerate(params):
        h = h @ w + b
        if i < len(params) - 1:
            h = jnp.maximum(h, 0.0)
    return h


def _ref_forward_matched(x, w_slab, b_slab):
    """Reference applying the identical padded / bf16-operand / f32-acc recipe."""
    B = x.shape[0]
    h = jnp.zeros((PAD_F, B), MATMUL_DTYPE).at[:FEATS[0], :].set(
        x.T.astype(MATMUL_DTYPE))
    for i in range(N_LAYERS):
        z = jnp.dot(w_slab[i], h, preferred_element_type=jnp.float32) + b_slab[i]
        h = jnp.maximum(z, 0.0).astype(MATMUL_DTYPE) if i < N_LAYERS - 1 else z
    return h[0, :][:, None]


if __name__ == "__main__":
    key = jax.random.PRNGKey(0)
    kx, kp = jax.random.split(key)

    batch = 37    # small; exercises lane padding with a single grid step
    x = jax.random.normal(kx, (batch, FEATS[0]), jnp.float32)
    params = init_params(kp)
    w_slab, b_slab = pack_params(params)      # one-time packing, outside the jit

    out = encoder_net_block(x, w_slab, b_slab)
    out = jax.block_until_ready(out)
    assert out.shape == (batch, 1), out.shape

    # Agreement with a reference using the identical bf16-matmul recipe.
    ref_m = _ref_forward_matched(x, w_slab, b_slab)
    assert jnp.allclose(out, ref_m, atol=2e-3, rtol=2e-3), (
        float(jnp.max(jnp.abs(out - ref_m))))

    # Agreement with pure-f32 PyTorch semantics (bf16 MXU operands => looser tol).
    ref_f32 = _ref_forward_f32(x, params)
    assert jnp.allclose(out, ref_f32, atol=5e-2, rtol=5e-2), (
        float(jnp.max(jnp.abs(out - ref_f32))))

    print("KERNEL_OK")
</pallas_src>

<mosaic_0001>
module attributes {stable_mosaic.version = 11 : i64} {
  func.func @_mlp_kernel(%arg0: i32, %arg1: memref<16x128xbf16, #tpu.memory_space<vmem>>, %arg2: memref<5x16x16xbf16, #tpu.memory_space<vmem>>, %arg3: memref<5x16x1xf32, #tpu.memory_space<vmem>>, %arg4: memref<1x128xf32, #tpu.memory_space<vmem>>) attributes {dimension_semantics = [#tpu.dimension_semantics<parallel>], iteration_bounds = array<i64: 1>, scalar_prefetch = 0 : i64, scratch_operands = 0 : i64, tpu.core_type = #tpu.core_type<tc>, window_params = [{transform_indices = @transform_0, window_bounds = array<i64: 16, 128>}, {pipeline_mode = #tpu.pipeline_mode<synchronous>, transform_indices = @transform_1, window_bounds = array<i64: 5, 16, 16>}, {pipeline_mode = #tpu.pipeline_mode<synchronous>, transform_indices = @transform_2, window_bounds = array<i64: 5, 16, 1>}, {transform_indices = @transform_3, window_bounds = array<i64: 1, 128>}]} {
    %c0 = arith.constant 0 : index
    %c0_0 = arith.constant 0 : index
    %0 = vector.load %arg1[%c0, %c0_0] : memref<16x128xbf16, #tpu.memory_space<vmem>>, vector<16x128xbf16>
    %c0_1 = arith.constant 0 : index
    %c0_2 = arith.constant 0 : index
    %c0_3 = arith.constant 0 : index
    %1 = vector.load %arg2[%c0_1, %c0_2, %c0_3] : memref<5x16x16xbf16, #tpu.memory_space<vmem>>, vector<1x16x16xbf16>
    %2 = vector.shape_cast %1 : vector<1x16x16xbf16> to vector<16x16xbf16>
    %cst = arith.constant dense<0.000000e+00> : vector<16x128xf32>
    %3 = tpu.matmul %2, %0, %cst {dimension_numbers = #tpu.dot_dimension_numbers<[1], [0], [0], [1], [0, 0, 1, 1], [], []>} : vector<16x16xbf16>, vector<16x128xbf16>, vector<16x128xf32> -> vector<16x128xf32>
    %c0_4 = arith.constant 0 : index
    %c0_5 = arith.constant 0 : index
    %c0_6 = arith.constant 0 : index
    %4 = vector.load %arg3[%c0_4, %c0_5, %c0_6] : memref<5x16x1xf32, #tpu.memory_space<vmem>>, vector<1x16x1xf32>
    %5 = vector.shape_cast %4 : vector<1x16x1xf32> to vector<16x1xf32>
    %6 = vector.broadcast %5 : vector<16x1xf32> to vector<16x128xf32>
    %7 = arith.addf %3, %6 : vector<16x128xf32>
    %cst_7 = arith.constant 0.000000e+00 : f32
    %8 = vector.broadcast %cst_7 : f32 to vector<16x128xf32>
    %9 = arith.maximumf %7, %8 : vector<16x128xf32>
    %10 = arith.truncf %9 : vector<16x128xf32> to vector<16x128xbf16>
    %c1 = arith.constant 1 : index
    %c0_8 = arith.constant 0 : index
    %c0_9 = arith.constant 0 : index
    %11 = vector.load %arg2[%c1, %c0_8, %c0_9] : memref<5x16x16xbf16, #tpu.memory_space<vmem>>, vector<1x16x16xbf16>
    %12 = vector.shape_cast %11 : vector<1x16x16xbf16> to vector<16x16xbf16>
    %cst_10 = arith.constant dense<0.000000e+00> : vector<16x128xf32>
    %13 = tpu.matmul %12, %10, %cst_10 {dimension_numbers = #tpu.dot_dimension_numbers<[1], [0], [0], [1], [0, 0, 1, 1], [], []>} : vector<16x16xbf16>, vector<16x128xbf16>, vector<16x128xf32> -> vector<16x128xf32>
    %c1_11 = arith.constant 1 : index
    %c0_12 = arith.constant 0 : index
    %c0_13 = arith.constant 0 : index
    %14 = vector.load %arg3[%c1_11, %c0_12, %c0_13] : memref<5x16x1xf32, #tpu.memory_space<vmem>>, vector<1x16x1xf32>
    %15 = vector.shape_cast %14 : vector<1x16x1xf32> to vector<16x1xf32>
    %16 = vector.broadcast %15 : vector<16x1xf32> to vector<16x128xf32>
    %17 = arith.addf %13, %16 : vector<16x128xf32>
    %cst_14 = arith.constant 0.000000e+00 : f32
    %18 = vector.broadcast %cst_14 : f32 to vector<16x128xf32>
    %19 = arith.maximumf %17, %18 : vector<16x128xf32>
    %20 = arith.truncf %19 : vector<16x128xf32> to vector<16x128xbf16>
    %c2 = arith.constant 2 : index
    %c0_15 = arith.constant 0 : index
    %c0_16 = arith.constant 0 : index
    %21 = vector.load %arg2[%c2, %c0_15, %c0_16] : memref<5x16x16xbf16, #tpu.memory_space<vmem>>, vector<1x16x16xbf16>
    %22 = vector.shape_cast %21 : vector<1x16x16xbf16> to vector<16x16xbf16>
    %cst_17 = arith.constant dense<0.000000e+00> : vector<16x128xf32>
    %23 = tpu.matmul %22, %20, %cst_17 {dimension_numbers = #tpu.dot_dimension_numbers<[1], [0], [0], [1], [0, 0, 1, 1], [], []>} : vector<16x16xbf16>, vector<16x128xbf16>, vector<16x128xf32> -> vector<16x128xf32>
    %c2_18 = arith.constant 2 : index
    %c0_19 = arith.constant 0 : index
    %c0_20 = arith.constant 0 : index
    %24 = vector.load %arg3[%c2_18, %c0_19, %c0_20] : memref<5x16x1xf32, #tpu.memory_space<vmem>>, vector<1x16x1xf32>
    %25 = vector.shape_cast %24 : vector<1x16x1xf32> to vector<16x1xf32>
    %26 = vector.broadcast %25 : vector<16x1xf32> to vector<16x128xf32>
    %27 = arith.addf %23, %26 : vector<16x128xf32>
    %cst_21 = arith.constant 0.000000e+00 : f32
    %28 = vector.broadcast %cst_21 : f32 to vector<16x128xf32>
    %29 = arith.maximumf %27, %28 : vector<16x128xf32>
    %30 = arith.truncf %29 : vector<16x128xf32> to vector<16x128xbf16>
    %c3 = arith.constant 3 : index
    %c0_22 = arith.constant 0 : index
    %c0_23 = arith.constant 0 : index
    %31 = vector.load %arg2[%c3, %c0_22, %c0_23] : memref<5x16x16xbf16, #tpu.memory_space<vmem>>, vector<1x16x16xbf16>
    %32 = vector.shape_cast %31 : vector<1x16x16xbf16> to vector<16x16xbf16>
    %cst_24 = arith.constant dense<0.000000e+00> : vector<16x128xf32>
    %33 = tpu.matmul %32, %30, %cst_24 {dimension_numbers = #tpu.dot_dimension_numbers<[1], [0], [0], [1], [0, 0, 1, 1], [], []>} : vector<16x16xbf16>, vector<16x128xbf16>, vector<16x128xf32> -> vector<16x128xf32>
    %c3_25 = arith.constant 3 : index
    %c0_26 = arith.constant 0 : index
    %c0_27 = arith.constant 0 : index
    %34 = vector.load %arg3[%c3_25, %c0_26, %c0_27] : memref<5x16x1xf32, #tpu.memory_space<vmem>>, vector<1x16x1xf32>
    %35 = vector.shape_cast %34 : vector<1x16x1xf32> to vector<16x1xf32>
    %36 = vector.broadcast %35 : vector<16x1xf32> to vector<16x128xf32>
    %37 = arith.addf %33, %36 : vector<16x128xf32>
    %cst_28 = arith.constant 0.000000e+00 : f32
    %38 = vector.broadcast %cst_28 : f32 to vector<16x128xf32>
    %39 = arith.maximumf %37, %38 : vector<16x128xf32>
    %40 = arith.truncf %39 : vector<16x128xf32> to vector<16x128xbf16>
    %c4 = arith.constant 4 : index
    %c0_29 = arith.constant 0 : index
    %c0_30 = arith.constant 0 : index
    %41 = vector.load %arg2[%c4, %c0_29, %c0_30] : memref<5x16x16xbf16, #tpu.memory_space<vmem>>, vector<1x16x16xbf16>
    %42 = vector.shape_cast %41 : vector<1x16x16xbf16> to vector<16x16xbf16>
    %cst_31 = arith.constant dense<0.000000e+00> : vector<16x128xf32>
    %43 = tpu.matmul %42, %40, %cst_31 {dimension_numbers = #tpu.dot_dimension_numbers<[1], [0], [0], [1], [0, 0, 1, 1], [], []>} : vector<16x16xbf16>, vector<16x128xbf16>, vector<16x128xf32> -> vector<16x128xf32>
    %c4_32 = arith.constant 4 : index
    %c0_33 = arith.constant 0 : index
    %c0_34 = arith.constant 0 : index
    %44 = vector.load %arg3[%c4_32, %c0_33, %c0_34] : memref<5x16x1xf32, #tpu.memory_space<vmem>>, vector<1x16x1xf32>
    %45 = vector.shape_cast %44 : vector<1x16x1xf32> to vector<16x1xf32>
    %46 = vector.broadcast %45 : vector<16x1xf32> to vector<16x128xf32>
    %47 = arith.addf %43, %46 : vector<16x128xf32>
    %48 = vector.extract_strided_slice %47 {offsets = [0, 0], sizes = [1, 128], strides = [1, 1]} : vector<16x128xf32> to vector<1x128xf32>
    %c0_35 = arith.constant 0 : index
    %c0_36 = arith.constant 0 : index
    %49 = vector.load %arg4[%c0_35, %c0_36] : memref<1x128xf32, #tpu.memory_space<vmem>>, vector<1x128xf32>
    tpu.vector_store %arg4[%c0_35, %c0_36], %48 {strides = array<i32>} : memref<1x128xf32, #tpu.memory_space<vmem>>, vector<1x128xf32>,
    return
  }
  func.func @transform_0(%arg0: i32) -> (i32, i32) {
    %c0_i32 = arith.constant 0 : i32
    %c0_i32_0 = arith.constant 0 : i32
    return %c0_i32, %arg0 : i32, i32
  }
  func.func @transform_1(%arg0: i32) -> (i32, i32, i32) {
    %c0_i32 = arith.constant 0 : i32
    %c0_i32_0 = arith.constant 0 : i32
    %c0_i32_1 = arith.constant 0 : i32
    %c0_i32_2 = arith.constant 0 : i32
    return %c0_i32, %c0_i32_0, %c0_i32_1 : i32, i32, i32
  }
  func.func @transform_2(%arg0: i32) -> (i32, i32, i32) {
    %c0_i32 = arith.constant 0 : i32
    %c0_i32_0 = arith.constant 0 : i32
    %c0_i32_1 = arith.constant 0 : i32
    %c0_i32_2 = arith.constant 0 : i32
    return %c0_i32, %c0_i32_0, %c0_i32_1 : i32, i32, i32
  }
  func.func @transform_3(%arg0: i32) -> (i32, i32) {
    %c0_i32 = arith.constant 0 : i32
    %c0_i32_0 = arith.constant 0 : i32
    return %c0_i32, %arg0 : i32, i32
  }
}

</mosaic_0001>

<llo_original>
// kernel: encoder_net_block.1
$region0: #{encoder_net_block.1}
  #allocation0 [shape = 'u32[]', space=smem, size = 0x4, offset = 0x4, fixed_abs, tag = 'smem constant byte address 0x4 - core index']
  #allocation1 [shape = 'u32[144,128]{1,0:T(1,128)}', space=vmem, size = 0x12000, scoped, tag = 'internal scratch']
  %s0 = inlined_call_operand.vmem [shape: bf16[16,128], index: 0, kind: input, shape index: {}]
  %s1 = inlined_call_operand.vmem [shape: bf16[5,16,16], index: 1, kind: input, shape index: {}]
  %s2 = inlined_call_operand.vmem [shape: f32[5,16,1], index: 2, kind: input, shape index: {}]
  %s3 = inlined_call_operand.vmem [shape: f32[1,128], index: 3, kind: output, shape index: {}]
  %s4 = sld [smem:[#allocation0]]
  $region22: #{encoder_net_block.1} parent=0
    _
  %s6 = ssub.s32 1, %s4
  %s7 = scalar_select 0, %s6, %s4
  // Predicated region
  $region2: #{encoder_net_block.1} parent=0 // pred_check
    _
  $region3: #{encoder_net_block.1} parent=0 // pred_check_branch
    %9 = sbr.rel (0) target = $region5
  $region4: #{encoder_net_block.1} parent=0 // pred_region
    _
  $region5: #{encoder_net_block.1} parent=0 // pred_fallthru
    _
  // Predicated region
  $region6: #{encoder_net_block.1} parent=0 // pred_check
    _
  $region7: #{encoder_net_block.1} parent=0 // pred_check_branch
    %11 = sbr.rel (0) target = $region9
  $region8: #{encoder_net_block.1} parent=0 // pred_region
    _
  $region9: #{encoder_net_block.1} parent=0 // pred_fallthru
    _
  // Predicated region
  $region10: #{encoder_net_block.1} parent=0 // pred_check
    _
  $region11: #{encoder_net_block.1} parent=0 // pred_check_branch
    %13 = sbr.rel (0) target = $region13
  $region12: #{encoder_net_block.1} parent=0 // pred_region
    _
  $region13: #{encoder_net_block.1} parent=0 // pred_fallthru
    _
  %v15 = vld [vmem:[%s0] sm:$0xf]
  %v16 = vld [vmem:[%s0 + $0x4] sm:$0xf]
  %v17 = vld [vmem:[%s1] sm:$0xf]
  %v18 = vld [vmem:[%s1 + $0x4] sm:$0xf]
  %v19 = vld [vmem:[%s2] sm:$0xff]
  %v20 = vld [vmem:[%s2 + $0x8] sm:$0xff]
  %22 = vset.pattern.permute.xlu0 0
  %23 = vperm.xlu0 %22, %v19
  %v24 = vpop.permute.xlu0 %23
  %27 = vset.pattern.permute.xlu0 0
  %28 = vperm.xlu0 %27, %v20
  %v29 = vpop.permute.xlu0 %28
  %v33 = vunpack.c.l.b16 %v17
  %v34 = vunpack.c.l.b16 %v18
  %v35 = vpack.c.b16 %v34, %v33
  %v38 = vunpack.c.l.b16 %v15
  %v39 = vunpack.c.l.b16 %v16
  %v40 = vpack.c.b16 %v39, %v38
  %vm42 = vcmask 130048
  %v44 = vsel %vm42, %v35, 0
  %46 = vmatprep.subr.bf16.mxu0 0
  %47 = vmatpush1.bf16.msra.mxu0 %v40
  %48 = vmatprep.subr.bf16.mxu0 0
  %49 = vmatpush1.bf16.msra.mxu0 0
  %50 = vmatprep.subr.bf16.mxu0 0
  %51 = vmatpush1.bf16.msra.mxu0 0
  %52 = vmatprep.subr.bf16.mxu0 0
  %53 = vmatpush1.bf16.msra.mxu0 0
  %54 = vmatprep.subr.bf16.mxu0 0
  %55 = vmatpush1.bf16.msra.mxu0 0
  %56 = vmatprep.subr.bf16.mxu0 0
  %57 = vmatpush1.bf16.msra.mxu0 0
  %58 = vmatprep.subr.bf16.mxu0 0
  %59 = vmatpush1.bf16.msra.mxu0 0
  %60 = vmatprep.subr.bf16.mxu0 0
  %61 = vmatpush1.bf16.msra.mxu0 0
  %62 = vmatprep.subr.bf16.mxu0 0
  %63 = vmatpush1.bf16.msra.mxu0 0
  %64 = vmatprep.subr.bf16.mxu0 0
  %65 = vmatpush1.bf16.msra.mxu0 0
  %66 = vmatprep.subr.bf16.mxu0 0
  %67 = vmatpush1.bf16.msra.mxu0 0
  %68 = vmatprep.subr.bf16.mxu0 0
  %69 = vmatpush1.bf16.msra.mxu0 0
  %70 = vmatprep.subr.bf16.mxu0 0
  %71 = vmatpush1.bf16.msra.mxu0 0
  %72 = vmatprep.subr.bf16.mxu0 0
  %73 = vmatpush1.bf16.msra.mxu0 0
  %74 = vmatprep.subr.bf16.mxu0 0
  %75 = vmatpush1.bf16.msra.mxu0 0
  %76 = vmatprep.subr.bf16.mxu0 0
  %77 = vmatpush1.bf16.msra.mxu0 0
  %78 = vmatprep.mubr.bf16.mxu0 0
  %79 = vmatmul.mubr.bf16.gmra.mrb[0].mxu0 %v44
  %v80 = vpop.f32.mrb[0].mxu0
  %v81 = vadd.f32 %v24, %v80
  %v82 = vpop.f32.mrb[0].mxu0
  %v83 = vpop.f32.mrb[0].mxu0
  %v84 = vadd.f32 %v29, %v83
  %v85 = vpop.f32.mrb[0].mxu0
  %86 = vdwg.mxu0
  %v87 = vmax.f32 %v81, 0.0
  %v88 = vmax.f32 %v84, 0.0
  %v89 = vpack.c.bf16 %v88, %v87
  %s90 = scalar_lea.vmem %s1, 8
  %v91 = vld [vmem:[%s90] sm:$0xf]
  %v92 = vld [vmem:[%s90 + $0x4] sm:$0xf]
  %s93 = scalar_lea.vmem %s2, 16
  %v94 = vld [vmem:[%s93] sm:$0xff]
  %v95 = vld [vmem:[%s93 + $0x8] sm:$0xff]
  %97 = vset.pattern.permute.xlu0 0
  %98 = vperm.xlu0 %97, %v94
  %v99 = vpop.permute.xlu0 %98
  %102 = vset.pattern.permute.xlu0 0
  %103 = vperm.xlu0 %102, %v95
  %v104 = vpop.permute.xlu0 %103
  %v108 = vunpack.c.l.b16 %v91
  %v109 = vunpack.c.l.b16 %v92
  %v110 = vpack.c.b16 %v109, %v108
  %v112 = vsel %vm42, %v110, 0
  %114 = vmatprep.subr.bf16.mxu0 0
  %115 = vmatpush1.bf16.msra.mxu0 %v89
  %116 = vmatprep.subr.bf16.mxu0 0
  %117 = vmatpush1.bf16.msra.mxu0 0
  %118 = vmatprep.subr.bf16.mxu0 0
  %119 = vmatpush1.bf16.msra.mxu0 0
  %120 = vmatprep.subr.bf16.mxu0 0
  %121 = vmatpush1.bf16.msra.mxu0 0
  %122 = vmatprep.subr.bf16.mxu0 0
  %123 = vmatpush1.bf16.msra.mxu0 0
  %124 = vmatprep.subr.bf16.mxu0 0
  %125 = vmatpush1.bf16.msra.mxu0 0
  %126 = vmatprep.subr.bf16.mxu0 0
  %127 = vmatpush1.bf16.msra.mxu0 0
  %128 = vmatprep.subr.bf16.mxu0 0
  %129 = vmatpush1.bf16.msra.mxu0 0
  %130 = vmatprep.subr.bf16.mxu0 0
  %131 = vmatpush1.bf16.msra.mxu0 0
  %132 = vmatprep.subr.bf16.mxu0 0
  %133 = vmatpush1.bf16.msra.mxu0 0
  %134 = vmatprep.subr.bf16.mxu0 0
  %135 = vmatpush1.bf16.msra.mxu0 0
  %136 = vmatprep.subr.bf16.mxu0 0
  %137 = vmatpush1.bf16.msra.mxu0 0
  %138 = vmatprep.subr.bf16.mxu0 0
  %139 = vmatpush1.bf16.msra.mxu0 0
  %140 = vmatprep.subr.bf16.mxu0 0
  %141 = vmatpush1.bf16.msra.mxu0 0
  %142 = vmatprep.subr.bf16.mxu0 0
  %143 = vmatpush1.bf16.msra.mxu0 0
  %144 = vmatprep.subr.bf16.mxu0 0
  %145 = vmatpush1.bf16.msra.mxu0 0
  %146 = vmatprep.mubr.bf16.mxu0 0
  %147 = vmatmul.mubr.bf16.gmra.mrb[0].mxu0 %v112
  %v148 = vpop.f32.mrb[0].mxu0
  %v149 = vadd.f32 %v99, %v148
  %v150 = vpop.f32.mrb[0].mxu0
  %v151 = vpop.f32.mrb[0].mxu0
  %v152 = vadd.f32 %v104, %v151
  %v153 = vpop.f32.mrb[0].mxu0
  %154 = vdwg.mxu0
  %v155 = vmax.f32 %v149, 0.0
  %v156 = vmax.f32 %v152, 0.0
  %v157 = vpack.c.bf16 %v156, %v155
  %s158 = scalar_lea.vmem %s1, 16
  %v159 = vld [vmem:[%s158] sm:$0xf]
  %v160 = vld [vmem:[%s158 + $0x4] sm:$0xf]
  %s161 = scalar_lea.vmem %s2, 32
  %v162 = vld [vmem:[%s161] sm:$0xff]
  %v163 = vld [vmem:[%s161 + $0x8] sm:$0xff]
  %165 = vset.pattern.permute.xlu0 0
  %166 = vperm.xlu0 %165, %v162
  %v167 = vpop.permute.xlu0 %166
  %170 = vset.pattern.permute.xlu0 0
  %171 = vperm.xlu0 %170, %v163
  %v172 = vpop.permute.xlu0 %171
  %v176 = vunpack.c.l.b16 %v159
  %v177 = vunpack.c.l.b16 %v160
  %v178 = vpack.c.b16 %v177, %v176
  %v180 = vsel %vm42, %v178, 0
  %182 = vmatprep.subr.bf16.mxu0 0
  %183 = vmatpush1.bf16.msra.mxu0 %v157
  %184 = vmatprep.subr.bf16.mxu0 0
  %185 = vmatpush1.bf16.msra.mxu0 0
  %186 = vmatprep.subr.bf16.mxu0 0
  %187 = vmatpush1.bf16.msra.mxu0 0
  %188 = vmatprep.subr.bf16.mxu0 0
  %189 = vmatpush1.bf16.msra.mxu0 0
  %190 = vmatprep.subr.bf16.mxu0 0
  %191 = vmatpush1.bf16.msra.mxu0 0
  %192 = vmatprep.subr.bf16.mxu0 0
  %193 = vmatpush1.bf16.msra.mxu0 0
  %194 = vmatprep.subr.bf16.mxu0 0
  %195 = vmatpush1.bf16.msra.mxu0 0
  %196 = vmatprep.subr.bf16.mxu0 0
  %197 = vmatpush1.bf16.msra.mxu0 0
  %198 = vmatprep.subr.bf16.mxu0 0
  %199 = vmatpush1.bf16.msra.mxu0 0
  %200 = vmatprep.subr.bf16.mxu0 0
  %201 = vmatpush1.bf16.msra.mxu0 0
  %202 = vmatprep.subr.bf16.mxu0 0
  %203 = vmatpush1.bf16.msra.mxu0 0
  %204 = vmatprep.subr.bf16.mxu0 0
  %205 = vmatpush1.bf16.msra.mxu0 0
  %206 = vmatprep.subr.bf16.mxu0 0
  %207 = vmatpush1.bf16.msra.mxu0 0
  %208 = vmatprep.subr.bf16.mxu0 0
  %209 = vmatpush1.bf16.msra.mxu0 0
  %210 = vmatprep.subr.bf16.mxu0 0
  %211 = vmatpush1.bf16.msra.mxu0 0
  %212 = vmatprep.subr.bf16.mxu0 0
  %213 = vmatpush1.bf16.msra.mxu0 0
  %214 = vmatprep.mubr.bf16.mxu0 0
  %215 = vmatmul.mubr.bf16.gmra.mrb[0].mxu0 %v180
  %v216 = vpop.f32.mrb[0].mxu0
  %v217 = vadd.f32 %v167, %v216
  %v218 = vpop.f32.mrb[0].mxu0
  %v219 = vpop.f32.mrb[0].mxu0
  %v220 = vadd.f32 %v172, %v219
  %v221 = vpop.f32.mrb[0].mxu0
  %222 = vdwg.mxu0
  %v223 = vmax.f32 %v217, 0.0
  %v224 = vmax.f32 %v220, 0.0
  %v225 = vpack.c.bf16 %v224, %v223
  %s226 = scalar_lea.vmem %s1, 24
  %v227 = vld [vmem:[%s226] sm:$0xf]
  %v228 = vld [vmem:[%s226 + $0x4] sm:$0xf]
  %s229 = scalar_lea.vmem %s2, 48
  %v230 = vld [vmem:[%s229] sm:$0xff]
  %v231 = vld [vmem:[%s229 + $0x8] sm:$0xff]
  %233 = vset.pattern.permute.xlu0 0
  %234 = vperm.xlu0 %233, %v230
  %v235 = vpop.permute.xlu0 %234
  %238 = vset.pattern.permute.xlu0 0
  %239 = vperm.xlu0 %238, %v231
  %v240 = vpop.permute.xlu0 %239
  %v244 = vunpack.c.l.b16 %v227
  %v245 = vunpack.c.l.b16 %v228
  %v246 = vpack.c.b16 %v245, %v244
  %v248 = vsel %vm42, %v246, 0
  %250 = vmatprep.subr.bf16.mxu0 0
  %251 = vmatpush1.bf16.msra.mxu0 %v225
  %252 = vmatprep.subr.bf16.mxu0 0
  %253 = vmatpush1.bf16.msra.mxu0 0
  %254 = vmatprep.subr.bf16.mxu0 0
  %255 = vmatpush1.bf16.msra.mxu0 0
  %256 = vmatprep.subr.bf16.mxu0 0
  %257 = vmatpush1.bf16.msra.mxu0 0
  %258 = vmatprep.subr.bf16.mxu0 0
  %259 = vmatpush1.bf16.msra.mxu0 0
  %260 = vmatprep.subr.bf16.mxu0 0
  %261 = vmatpush1.bf16.msra.mxu0 0
  %262 = vmatprep.subr.bf16.mxu0 0
  %263 = vmatpush1.bf16.msra.mxu0 0
  %264 = vmatprep.subr.bf16.mxu0 0
  %265 = vmatpush1.bf16.msra.mxu0 0
  %266 = vmatprep.subr.bf16.mxu0 0
  %267 = vmatpush1.bf16.msra.mxu0 0
  %268 = vmatprep.subr.bf16.mxu0 0
  %269 = vmatpush1.bf16.msra.mxu0 0
  %270 = vmatprep.subr.bf16.mxu0 0
  %271 = vmatpush1.bf16.msra.mxu0 0
  %272 = vmatprep.subr.bf16.mxu0 0
  %273 = vmatpush1.bf16.msra.mxu0 0
  %274 = vmatprep.subr.bf16.mxu0 0
  %275 = vmatpush1.bf16.msra.mxu0 0
  %276 = vmatprep.subr.bf16.mxu0 0
  %277 = vmatpush1.bf16.msra.mxu0 0
  %278 = vmatprep.subr.bf16.mxu0 0
  %279 = vmatpush1.bf16.msra.mxu0 0
  %280 = vmatprep.subr.bf16.mxu0 0
  %281 = vmatpush1.bf16.msra.mxu0 0
  %282 = vmatprep.mubr.bf16.mxu0 0
  %283 = vmatmul.mubr.bf16.gmra.mrb[0].mxu0 %v248
  %v284 = vpop.f32.mrb[0].mxu0
  %v285 = vadd.f32 %v235, %v284
  %v286 = vpop.f32.mrb[0].mxu0
  %v287 = vpop.f32.mrb[0].mxu0
  %v288 = vadd.f32 %v240, %v287
  %v289 = vpop.f32.mrb[0].mxu0
  %290 = vdwg.mxu0
  %v291 = vmax.f32 %v285, 0.0
  %v292 = vmax.f32 %v288, 0.0
  %v293 = vpack.c.bf16 %v292, %v291
  %s294 = scalar_lea.vmem %s1, 32
  %v295 = vld [vmem:[%s294] sm:$0xf]
  %v296 = vld [vmem:[%s294 + $0x4] sm:$0xf]
  %s297 = scalar_lea.vmem %s2, 64
  %v298 = vld [vmem:[%s297] sm:$0xff]
  %v299 = vld [vmem:[%s297 + $0x8] sm:$0xff]
  %301 = vset.pattern.permute.xlu0 0
  %302 = vperm.xlu0 %301, %v298
  %v303 = vpop.permute.xlu0 %302
  %306 = vset.pattern.permute.xlu0 0
  %307 = vperm.xlu0 %306, %v299
  %v308 = vpop.permute.xlu0 %307
  %v311 = vunpack.c.l.b16 %v295
  %v312 = vunpack.c.l.b16 %v296
  %v313 = vpack.c.b16 %v312, %v311
  %v315 = vsel %vm42, %v313, 0
  %317 = vmatprep.subr.bf16.mxu0 0
  %318 = vmatpush1.bf16.msra.mxu0 %v293
  %319 = vmatprep.subr.bf16.mxu0 0
  %320 = vmatpush1.bf16.msra.mxu0 0
  %321 = vmatprep.subr.bf16.mxu0 0
  %322 = vmatpush1.bf16.msra.mxu0 0
  %323 = vmatprep.subr.bf16.mxu0 0
  %324 = vmatpush1.bf16.msra.mxu0 0
  %325 = vmatprep.subr.bf16.mxu0 0
  %326 = vmatpush1.bf16.msra.mxu0 0
  %327 = vmatprep.subr.bf16.mxu0 0
  %328 = vmatpush1.bf16.msra.mxu0 0
  %329 = vmatprep.subr.bf16.mxu0 0
  %330 = vmatpush1.bf16.msra.mxu0 0
  %331 = vmatprep.subr.bf16.mxu0 0
  %332 = vmatpush1.bf16.msra.mxu0 0
  %333 = vmatprep.subr.bf16.mxu0 0
  %334 = vmatpush1.bf16.msra.mxu0 0
  %335 = vmatprep.subr.bf16.mxu0 0
  %336 = vmatpush1.bf16.msra.mxu0 0
  %337 = vmatprep.subr.bf16.mxu0 0
  %338 = vmatpush1.bf16.msra.mxu0 0
  %339 = vmatprep.subr.bf16.mxu0 0
  %340 = vmatpush1.bf16.msra.mxu0 0
  %341 = vmatprep.subr.bf16.mxu0 0
  %342 = vmatpush1.bf16.msra.mxu0 0
  %343 = vmatprep.subr.bf16.mxu0 0
  %344 = vmatpush1.bf16.msra.mxu0 0
  %345 = vmatprep.subr.bf16.mxu0 0
  %346 = vmatpush1.bf16.msra.mxu0 0
  %347 = vmatprep.subr.bf16.mxu0 0
  %348 = vmatpush1.bf16.msra.mxu0 0
  %349 = vmatprep.mubr.bf16.mxu0 0
  %350 = vmatmul.mubr.bf16.gmra.mrb[0].mxu0 %v315
  %v351 = vpop.f32.mrb[0].mxu0
  %v352 = vadd.f32 %v303, %v351
  %v353 = vpop.f32.mrb[0].mxu0
  %v354 = vpop.f32.mrb[0].mxu0
  %v355 = vpop.f32.mrb[0].mxu0
  %356 = vdwg.mxu0
  %357 = vst [vmem:[%s3] sm:$0x1] %v352
  // Predicated region
  $region14: #{encoder_net_block.1} parent=0 // pred_check
    _
  $region15: #{encoder_net_block.1} parent=0 // pred_check_branch
    %359 = sbr.rel (0) target = $region17
  $region16: #{encoder_net_block.1} parent=0 // pred_region
    _
  $region17: #{encoder_net_block.1} parent=0 // pred_fallthru
    _
  // Predicated region
  $region18: #{encoder_net_block.1} parent=0 // pred_check
    _
  $region19: #{encoder_net_block.1} parent=0 // pred_check_branch
    %361 = sbr.rel (0) target = $region21
  $region20: #{encoder_net_block.1} parent=0 // pred_region
    _
  $region21: #{encoder_net_block.1} parent=0 // pred_fallthru
    _

</llo_original>
